<compile_context>
chip_gen: v5e
topology: v5e:2x2
jax: 0.10.0
libtpu: 0.0.40
codegen_flags: <defaults>
</compile_context>

<pallas_src>
from functools import partial

import jax
import jax.numpy as jnp
from jax import lax
from jax.experimental import pallas as pl
from jax.experimental.pallas import tpu as pltpu

BN_EPS = 1e-5  # nn.BatchNorm2d default


# --------------------------------------------------------------------------- kernels
def gap_c_reduce_kernel(x_ref, w_ref, b_ref, o_ref, acc_ref, *, inv_hw):
    """Channel-reduction variant.

    x_ref:   (TB, TC, HW)  full spatial extent -> contiguous HW rows per (b, c)
    w_ref:   (TC, NID)     BN-folded conv weights for this channel slice
    b_ref:   (1, NID)      BN-folded conv bias
    o_ref:   (TB, NID)
    acc_ref: (TB, NID) f32, persists across the channel ("arbitrary") grid axis
    """
    ci = pl.program_id(1)

    @pl.when(ci == 0)
    def _():
        acc_ref[...] = jnp.zeros_like(acc_ref)

    # Spatial mean of this channel slice: lane-tile VPU adds + one cross-lane reduce
    # per 8 rows, negligible next to the HBM stream of the x block.
    pooled = jnp.sum(x_ref[...].astype(jnp.float32), axis=-1) * inv_hw   # (TB, TC)
    acc_ref[...] += jnp.dot(pooled, w_ref[...],
                            preferred_element_type=jnp.float32)

    @pl.when(ci == pl.num_programs(1) - 1)
    def _():
        o_ref[...] = (acc_ref[...] + b_ref[...]).astype(o_ref.dtype)


def gap_hw_reduce_kernel(x_ref, w_ref, b_ref, o_ref, acc_ref, *,
                         inv_hw, n_lane_tiles):
    """Spatial-reduction fallback (tiny C x huge, 128-aligned HW).

    x_ref:   (TB, C, THW) with THW % 128 == 0
    w_ref:   (C, NID), b_ref: (1, NID), o_ref: (TB, NID)
    acc_ref: (TB, C, 128) f32 lane-wide accumulator (persists across the HW axis)
    """
    hi = pl.program_id(1)

    @pl.when(hi == 0)
    def _():
        acc_ref[...] = jnp.zeros_like(acc_ref)

    # Hot loop: static 128-lane slices -> pure vld + VPU adds (no cross-lane XLU
    # work, no relayout); the single lane reduce happens once in the finalize.
    psum = x_ref[:, :, 0:128].astype(jnp.float32)
    for t in range(1, n_lane_tiles):
        psum = psum + x_ref[:, :, t * 128:(t + 1) * 128].astype(jnp.float32)
    acc_ref[...] += psum                                                 # (TB, C, 128)

    @pl.when(hi == pl.num_programs(1) - 1)
    def _():
        pooled = jnp.sum(acc_ref[...], axis=-1) * inv_hw                 # (TB, C)
        z = jnp.dot(pooled, w_ref[...], preferred_element_type=jnp.float32)
        o_ref[...] = (z + b_ref[...]).astype(o_ref.dtype)


# --------------------------------------------------------------------- tile planning
def _vmem_budget_bytes():
    """(per-x-buffer budget, cap for vmem_limit_bytes), per TPU generation."""
    try:
        phys = int(getattr(pltpu.get_tpu_info(), "vmem_capacity_bytes", 128 << 20))
    except Exception:
        phys = 64 << 20          # unknown -> assume the smaller (v7x-like) VMEM
    if phys <= (64 << 20):       # v7x-class: 64 MiB VMEM per TensorCore
        return 12 << 20, 48 << 20
    return 16 << 20, 96 << 20    # v5e / v6e-class: 128 MiB VMEM


def _legal_tiles(n, unit):
    """Divisors of n that are multiples of `unit`, plus n itself (descending)."""
    tiles = {n}
    d = unit
    while d < n:
        if n % d == 0:
            tiles.add(d)
        d += unit
    return sorted(tiles, reverse=True)


def _plan(B, C, HW, num_id, per_buf):
    """Choose (variant, tb, tile, x_block_bytes, acc_bytes)."""
    itemsize = 4
    tbs = _legal_tiles(B, 8)

    def score(tb, blk):
        # Prefer >=2 batch tiles (v7x megacore sharding of the "parallel" axis),
        # then the biggest block that fits the per-buffer budget.
        return (1 if B // tb >= 2 else 0, blk)

    # Primary: channel-reduction variant (contiguous full-HW DMA rows).
    best_c = None
    for tc in _legal_tiles(C, 8):
        for tb in tbs:
            blk = tb * tc * HW * itemsize
            if blk > per_buf:
                continue
            s = score(tb, blk)
            if best_c is None or s > best_c[0]:
                best_c = (s, tb, tc, blk)
    if best_c is not None:
        _, tb, tc, blk = best_c
        return "c", tb, tc, blk, tb * num_id * 4

    # Fallback: spatial-reduction variant (tiny C, huge 128-aligned HW).
    if HW % 128 == 0:
        best_hw = None
        for thw in _legal_tiles(HW, 128):
            if thw > 2048:               # bound the hot-loop unroll to <=16 lane tiles
                continue
            for tb in tbs:
                blk = tb * C * thw * itemsize
                acc = tb * C * 128 * 4
                if blk > per_buf or acc > per_buf:
                    continue
                s = score(tb, blk)
                if best_hw is None or s > best_hw[0]:
                    best_hw = (s, tb, thw, blk, acc)
        if best_hw is not None:
            _, tb, thw, blk, acc = best_hw
            return "hw", tb, thw, blk, acc

    # Hardened last resort: smallest legal channel-reduction block even if it exceeds
    # the per-generation target budget (vmem_limit is sized from it, capped below).
    # TODO(synk): add a masked-tail path instead of whole-row fallbacks for truly
    # pathological (tiny-C x huge non-128-aligned HW, B not a multiple of 8) shapes.
    tb = min(tbs)
    tc = min(_legal_tiles(C, 8))
    return "c", tb, tc, tb * tc * HW * itemsize, tb * num_id * 4


# -------------------------------------------------------------------------- wrapper
def gap_classifier_forward(x_nchw, params):
    """x_nchw: (B, C, H, W) float32. Returns (B, num_id) float32 pooled conv logits."""
    B, C, H, W = x_nchw.shape
    HW = H * W
    num_id = params["conv_w"].shape[0]

    # Fold the eval-mode BatchNorm affine into the 1x1 conv.
    scale = params["bn_gamma"] * lax.rsqrt(params["bn_var"] + BN_EPS)     # (C,)
    shift = params["bn_beta"] - params["bn_mean"] * scale                 # (C,)
    w2d = params["conv_w"].reshape(num_id, C)                             # (NID, C)
    w_fold = jnp.transpose(w2d * scale[None, :], (1, 0))                  # (C, NID)
    b_fold = (params["conv_b"] + w2d @ shift).reshape(1, num_id)          # (1, NID)

    # NCHW stays put; collapsing (H, W) -> HW is a metadata-only reshape.
    x = x_nchw.reshape(B, C, HW)

    per_buf, cap = _vmem_budget_bytes()
    variant, tb, tile, x_blk, acc_bytes = _plan(B, C, HW, num_id, per_buf)

    if variant == "c":
        tc = tile
        grid = (B // tb, C // tc)
        kernel = partial(gap_c_reduce_kernel, inv_hw=1.0 / HW)
        in_specs = [
            pl.BlockSpec((tb, tc, HW), lambda bi, ci: (bi, ci, 0)),
            pl.BlockSpec((tc, num_id), lambda bi, ci: (ci, 0)),
            pl.BlockSpec((1, num_id), lambda bi, ci: (0, 0)),
        ]
        scratch = [pltpu.VMEM((tb, num_id), jnp.float32)]
    else:
        thw = tile
        grid = (B // tb, HW // thw)
        kernel = partial(gap_hw_reduce_kernel, inv_hw=1.0 / HW,
                         n_lane_tiles=thw // 128)
        in_specs = [
            pl.BlockSpec((tb, C, thw), lambda bi, hi: (bi, 0, hi)),
            pl.BlockSpec((C, num_id), lambda bi, hi: (0, 0)),
            pl.BlockSpec((1, num_id), lambda bi, hi: (0, 0)),
        ]
        scratch = [pltpu.VMEM((tb, C, 128), jnp.float32)]

    # Explicit scoped-VMEM limit sized from the chosen tiling (double-buffered x,
    # params and output, plus the accumulator and slack), capped per generation.
    param_bytes = (w_fold.size + b_fold.size) * 4
    out_blk = tb * num_id * 4
    need = 2 * x_blk + 2 * param_bytes + 2 * out_blk + acc_bytes + (2 << 20)
    vmem_limit = int(min(cap, max(32 << 20, need)))

    cost = pl.CostEstimate(
        flops=int(B * C * HW + 2 * B * C * num_id),
        transcendentals=0,
        bytes_accessed=int((B * C * HW + C * num_id + num_id + B * num_id) * 4),
    )

    out = pl.pallas_call(
        kernel,
        out_shape=jax.ShapeDtypeStruct((B, num_id), jnp.float32),
        grid_spec=pltpu.PrefetchScalarGridSpec(
            num_scalar_prefetch=0,
            grid=grid,                       # (parallel batch tiles, reduction tiles)
            in_specs=in_specs,
            out_specs=pl.BlockSpec((tb, num_id), lambda bi, ri: (bi, 0)),
            scratch_shapes=scratch,
        ),
        compiler_params=pltpu.CompilerParams(
            dimension_semantics=("parallel", "arbitrary"),
            vmem_limit_bytes=vmem_limit,
        ),
        cost_estimate=cost,
    )(x, w_fold, b_fold)
    return out


# ----------------------------------------------------------------- params / reference
def init_params(key, feature_dim, num_identities):
    ks = jax.random.split(key, 6)
    return {
        # init.normal_(bn.weight, 1.0, 0.02); init.constant_(bn.bias, 0.0)
        "bn_gamma": 1.0 + 0.02 * jax.random.normal(ks[0], (feature_dim,), jnp.float32),
        "bn_beta": jnp.zeros((feature_dim,), jnp.float32),
        # running stats (non-trivial but deterministic)
        "bn_mean": 0.1 * jax.random.normal(ks[1], (feature_dim,), jnp.float32),
        "bn_var": 1.0 + 0.1 * jax.random.uniform(ks[2], (feature_dim,), jnp.float32),
        # Conv2d(feature_dim, num_identities, kernel_size=1)
        "conv_w": 0.05 * jax.random.normal(ks[3], (num_identities, feature_dim, 1, 1),
                                           jnp.float32),
        "conv_b": 0.05 * jax.random.normal(ks[4], (num_identities,), jnp.float32),
        # classifier (unused in forward): init.normal_(std=0.001), bias=0
        "cls_w": 0.001 * jax.random.normal(ks[5], (num_identities, feature_dim),
                                           jnp.float32),
        "cls_b": jnp.zeros((num_identities,), jnp.float32),
    }


def reference_forward(x_nchw, params):
    """Pure-JAX reference mirroring the PyTorch forward (eval-mode BN, avg pooling)."""
    C = x_nchw.shape[1]
    gamma = params["bn_gamma"].reshape(1, C, 1, 1)
    beta = params["bn_beta"].reshape(1, C, 1, 1)
    mean = params["bn_mean"].reshape(1, C, 1, 1)
    var = params["bn_var"].reshape(1, C, 1, 1)
    y = (x_nchw - mean) / jnp.sqrt(var + BN_EPS) * gamma + beta
    w = params["conv_w"].reshape(params["conv_w"].shape[0], C)  # (num_id, C)
    z = jnp.einsum("bchw,oc->bohw", y, w) + params["conv_b"].reshape(1, -1, 1, 1)
    return jnp.mean(z, axis=(2, 3))  # (B, num_id)


if __name__ == "__main__":
    key = jax.random.PRNGKey(0)
    kx, kp = jax.random.split(key)

    B, FEATURE_DIM, H, W = 2, 16, 8, 8
    NUM_IDENTITIES = 8

    x = jax.random.normal(kx, (B, FEATURE_DIM, H, W), jnp.float32)
    params = init_params(kp, FEATURE_DIM, NUM_IDENTITIES)

    out = gap_classifier_forward(x, params)
    out = jax.block_until_ready(out)

    ref = reference_forward(x, params)
    assert out.shape == (B, NUM_IDENTITIES), out.shape
    # Pool-first + BN-fold restructure is mathematically identical; only the order of
    # the (linear) operations differs.
    assert jnp.allclose(out, ref, atol=3e-5, rtol=1e-4), (out, ref)

    print("KERNEL_OK")
</pallas_src>

<mosaic_0001>
module attributes {stable_mosaic.version = 11 : i64} {
  func.func @gap_c_reduce_kernel(%arg0: i32, %arg1: i32, %arg2: memref<2x16x64xf32, #tpu.memory_space<vmem>>, %arg3: memref<16x8xf32, #tpu.memory_space<vmem>>, %arg4: memref<1x8xf32, #tpu.memory_space<vmem>>, %arg5: memref<2x8xf32, #tpu.memory_space<vmem>>, %arg6: memref<2x8xf32, #tpu.memory_space<vmem>>) attributes {dimension_semantics = [#tpu.dimension_semantics<parallel>, #tpu.dimension_semantics<arbitrary>], iteration_bounds = array<i64: 1, 1>, scalar_prefetch = 0 : i64, scratch_operands = 1 : i64, tpu.core_type = #tpu.core_type<tc>, window_params = [{transform_indices = @transform_0, window_bounds = array<i64: 2, 16, 64>}, {transform_indices = @transform_1, window_bounds = array<i64: 16, 8>}, {pipeline_mode = #tpu.pipeline_mode<synchronous>, transform_indices = @transform_2, window_bounds = array<i64: 1, 8>}, {transform_indices = @transform_3, window_bounds = array<i64: 2, 8>}]} {
    %c0_i32 = arith.constant 0 : i32
    %0 = arith.cmpi eq, %arg1, %c0_i32 : i32
    %1 = arith.extui %0 : i1 to i32
    %c0_i32_0 = arith.constant 0 : i32
    %2 = arith.cmpi ne, %1, %c0_i32_0 : i32
    scf.if %2 {
      %cst_13 = arith.constant 0.000000e+00 : f32
      %15 = vector.broadcast %cst_13 : f32 to vector<2x8xf32>
      %c0_14 = arith.constant 0 : index
      %c0_15 = arith.constant 0 : index
      %16 = vector.load %arg6[%c0_14, %c0_15] : memref<2x8xf32, #tpu.memory_space<vmem>>, vector<2x8xf32>
      tpu.vector_store %arg6[%c0_14, %c0_15], %15 {strides = array<i32>} : memref<2x8xf32, #tpu.memory_space<vmem>>, vector<2x8xf32>,
    } else {
    }
    %c0 = arith.constant 0 : index
    %c0_1 = arith.constant 0 : index
    %c0_2 = arith.constant 0 : index
    %3 = vector.load %arg2[%c0, %c0_1, %c0_2] : memref<2x16x64xf32, #tpu.memory_space<vmem>>, vector<2x16x64xf32>
    %cst = arith.constant dense<0.000000e+00> : vector<2x16xf32>
    %4 = vector.multi_reduction <add>, %3, %cst [2] : vector<2x16x64xf32> to vector<2x16xf32>
    %cst_3 = arith.constant 1.562500e-02 : f32
    %5 = vector.broadcast %cst_3 : f32 to vector<2x16xf32>
    %6 = arith.mulf %4, %5 : vector<2x16xf32>
    %c0_4 = arith.constant 0 : index
    %c0_5 = arith.constant 0 : index
    %7 = vector.load %arg6[%c0_4, %c0_5] : memref<2x8xf32, #tpu.memory_space<vmem>>, vector<2x8xf32>
    %c0_6 = arith.constant 0 : index
    %c0_7 = arith.constant 0 : index
    %8 = vector.load %arg3[%c0_6, %c0_7] : memref<16x8xf32, #tpu.memory_space<vmem>>, vector<16x8xf32>
    %cst_8 = arith.constant dense<0.000000e+00> : vector<2x8xf32>
    %9 = tpu.matmul %6, %8, %cst_8 {dimension_numbers = #tpu.dot_dimension_numbers<[1], [0], [0], [1], [0, 0, 1, 1], [], []>} : vector<2x16xf32>, vector<16x8xf32>, vector<2x8xf32> -> vector<2x8xf32>
    %10 = arith.addf %7, %9 : vector<2x8xf32>
    %c0_9 = arith.constant 0 : index
    %c0_10 = arith.constant 0 : index
    %11 = vector.load %arg6[%c0_9, %c0_10] : memref<2x8xf32, #tpu.memory_space<vmem>>, vector<2x8xf32>
    tpu.vector_store %arg6[%c0_9, %c0_10], %10 {strides = array<i32>} : memref<2x8xf32, #tpu.memory_space<vmem>>, vector<2x8xf32>,
    %c0_i32_11 = arith.constant 0 : i32
    %12 = arith.cmpi eq, %arg1, %c0_i32_11 : i32
    %13 = arith.extui %12 : i1 to i32
    %c0_i32_12 = arith.constant 0 : i32
    %14 = arith.cmpi ne, %13, %c0_i32_12 : i32
    scf.if %14 {
      %c0_13 = arith.constant 0 : index
      %c0_14 = arith.constant 0 : index
      %15 = vector.load %arg6[%c0_13, %c0_14] : memref<2x8xf32, #tpu.memory_space<vmem>>, vector<2x8xf32>
      %c0_15 = arith.constant 0 : index
      %c0_16 = arith.constant 0 : index
      %16 = vector.load %arg4[%c0_15, %c0_16] : memref<1x8xf32, #tpu.memory_space<vmem>>, vector<1x8xf32>
      %17 = vector.broadcast %16 : vector<1x8xf32> to vector<2x8xf32>
      %18 = arith.addf %15, %17 : vector<2x8xf32>
      %c0_17 = arith.constant 0 : index
      %c0_18 = arith.constant 0 : index
      %19 = vector.load %arg5[%c0_17, %c0_18] : memref<2x8xf32, #tpu.memory_space<vmem>>, vector<2x8xf32>
      tpu.vector_store %arg5[%c0_17, %c0_18], %18 {strides = array<i32>} : memref<2x8xf32, #tpu.memory_space<vmem>>, vector<2x8xf32>,
    } else {
    }
    return
  }
  func.func @transform_0(%arg0: i32, %arg1: i32) -> (i32, i32, i32) {
    %c0_i32 = arith.constant 0 : i32
    %c0_i32_0 = arith.constant 0 : i32
    return %arg0, %arg1, %c0_i32 : i32, i32, i32
  }
  func.func @transform_1(%arg0: i32, %arg1: i32) -> (i32, i32) {
    %c0_i32 = arith.constant 0 : i32
    %c0_i32_0 = arith.constant 0 : i32
    return %arg1, %c0_i32 : i32, i32
  }
  func.func @transform_2(%arg0: i32, %arg1: i32) -> (i32, i32) {
    %c0_i32 = arith.constant 0 : i32
    %c0_i32_0 = arith.constant 0 : i32
    %c0_i32_1 = arith.constant 0 : i32
    return %c0_i32, %c0_i32_0 : i32, i32
  }
  func.func @transform_3(%arg0: i32, %arg1: i32) -> (i32, i32) {
    %c0_i32 = arith.constant 0 : i32
    %c0_i32_0 = arith.constant 0 : i32
    return %arg0, %c0_i32 : i32, i32
  }
}

</mosaic_0001>

<llo_original>
// kernel: tpu_custom_call.1
$region0: #{tpu_custom_call.1}
  #allocation0 [shape = 'u32[]', space=smem, size = 0x4, offset = 0x4, fixed_abs, tag = 'smem constant byte address 0x4 - core index']
  #allocation1 [shape = 'u32[72,128]{1,0:T(1,128)}', space=vmem, size = 0x9000, scoped, tag = 'internal scratch']
  #allocation2 [shape = 'f32[2,8]{1,0:T(2,128)}', space=vmem, size = 0x400, scoped, tag = 'scratch operand']
  %s0 = inlined_call_operand.hbm [shape: f32[2,16,64], index: 0, kind: input, shape index: {}]
  %s1 = inlined_call_operand.vmem [shape: f32[16,8], index: 1, kind: input, shape index: {}]
  %s2 = inlined_call_operand.vmem [shape: f32[1,8], index: 2, kind: input, shape index: {}]
  %s3 = inlined_call_operand.hbm [shape: f32[2,8], index: 3, kind: output, shape index: {}]
  %s4 = sld [smem:[#allocation0]]
  $region34: #{tpu_custom_call.1} parent=0
    _
  %s6 = ssub.s32 1, %s4
  %s7 = scalar_select 0, %s6, %s4
  $region1: #{tpu_custom_call.1} parent=0
    #allocation3 [shape = 'u8[16384]{0}', space=vmem, size = 0x4000, scoped, tag = 'input window, operand 0, single buffered']
    #allocation4 [shape = 's32[1]{0}', space=sflag, size = 0x4, scoped, tag = 'scoped memory for tpu_custom_call.1']
    #allocation5 [shape = 's32[1]{0}', space=sflag, size = 0x4, scoped, tag = 'scoped memory for tpu_custom_call.1']
    #allocation6 [shape = 'u8[1024]{0}', space=vmem, size = 0x400, scoped, tag = 'output window, operand 0, single buffered']
    %8 = vsyncpa [#allocation4], 0
    %9 = vsyncpa [#allocation5], 0
    // Predicated region
    $region2: #{tpu_custom_call.1} parent=1 // pred_check
      _
    $region3: #{tpu_custom_call.1} parent=1 // pred_check_branch
      %11 = sbr.rel (0) target = $region5
    $region4: #{tpu_custom_call.1} parent=1 // pred_region
      %13 = vsyncadd [#allocation4], 0
      %s14 = sshll.u32 %s0, 4
      %s15 = int_to_ptr.hbm [resolvable:$true] %s14
      %s16 = sshll.u32 [#allocation3], 4
      %s17 = int_to_ptr.vmem [resolvable:$true] %s16
      %22 = dma.hbm_to_vmem [thread:$0]  %s15, 512, %s17, [#allocation4], 128, 128, 8
    $region5: #{tpu_custom_call.1} parent=1 // pred_fallthru
      _
    // Predicated region
    $region6: #{tpu_custom_call.1} parent=1 // pred_check
      _
    $region7: #{tpu_custom_call.1} parent=1 // pred_check_branch
      %24 = sbr.rel (0) target = $region9
    $region8: #{tpu_custom_call.1} parent=1 // pred_region
      _
    $region9: #{tpu_custom_call.1} parent=1 // pred_fallthru
      _
    // Predicated region
    $region10: #{tpu_custom_call.1} parent=1 // pred_check
      _
    $region11: #{tpu_custom_call.1} parent=1 // pred_check_branch
      %26 = sbr.rel (0) target = $region13
    $region12: #{tpu_custom_call.1} parent=1 // pred_region
      _
    $region13: #{tpu_custom_call.1} parent=1 // pred_fallthru
      _
    // Predicated region
    $region14: #{tpu_custom_call.1} parent=1 // pred_check
      _
    $region15: #{tpu_custom_call.1} parent=1 // pred_check_branch
      %28 = sbr.rel (0) target = $region17
    $region16: #{tpu_custom_call.1} parent=1 // pred_region
      %30 = dma.done [#allocation4], 512
    $region17: #{tpu_custom_call.1} parent=1 // pred_fallthru
      _
    %p31 = scmp.eq.s32.totalorder 0, 0
    // Predicated region
    $region18: #{tpu_custom_call.1} parent=1 // pred_check
      %p32 = pneg %p31
    $region19: #{tpu_custom_call.1} parent=1 // pred_check_branch
      %34 = sbr.rel (%p32) target = $region21
    $region20: #{tpu_custom_call.1} parent=1 // pred_region
      %vm35 = vcmask 58368
      %36 = vst.msk [vmem:[#allocation2] sm:$0x3] %vm35, 0.0
    $region21: #{tpu_custom_call.1} parent=1 // pred_fallthru
      _
    %v37 = vld [vmem:[#allocation3] sm:$0xff]
    %v38 = vld [vmem:[#allocation3 + $0x8] sm:$0xff]
    %v39 = vld [vmem:[#allocation3 + $0x10] sm:$0xff]
    %v40 = vld [vmem:[#allocation3 + $0x18] sm:$0xff]
    %vm41 = vcmask 523264
    %v42 = vsel %vm41, %v37, 0.0
    %43 = vadd.xlane.f32.xlu0 %v42
    %v44 = vpop.xlane.xlu0 %43
    %v45 = vsel %vm41, %v38, 0.0
    %46 = vadd.xlane.f32.xlu0 %v45
    %v47 = vpop.xlane.xlu0 %46
    %v48 = vsel %vm41, %v39, 0.0
    %49 = vadd.xlane.f32.xlu0 %v48
    %v50 = vpop.xlane.xlu0 %49
    %v51 = vsel %vm41, %v40, 0.0
    %52 = vadd.xlane.f32.xlu0 %v51
    %v53 = vpop.xlane.xlu0 %52
    %v54 = vmul.f32 %v44, 0.015625
    %v55 = vmul.f32 %v47, 0.015625
    %v56 = vmul.f32 %v50, 0.015625
    %v57 = vmul.f32 %v53, 0.015625
    %v58 = vld [vmem:[#allocation2] sm:$0x3]
    %v59 = vld [vmem:[%s1] sm:$0xff]
    %v60 = vld [vmem:[%s1 + $0x8] sm:$0xff]
    %v65 = vlaneseq
    %v66 = vand.u32 %v65, 127
    %v67 = vperm.slane %v54, %v66
    %v68 = vadd.s32 %v66, 4294967288
    %v69 = vperm.slane %v55, %v68
    %vm70 = vcmask 130112
    %v71 = vsel %vm70, %v69, %v67
    %v72 = vperm.slane %v56, %v66
    %v73 = vperm.slane %v57, %v68
    %v74 = vsel %vm70, %v73, %v72
    %vm75 = vcmask 1041409
    %v76 = vsel %vm75, %v74, %v71
    %vm77 = vcmask 130048
    %v78 = vsel %vm77, %v76, 0
    %80 = vmatpush.msra.mxu0 0.0
    %81 = vmatpush.msra.mxu0 0.0
    %82 = vmatpush.msra.mxu0 0.0
    %83 = vmatpush.msra.mxu0 0.0
    %84 = vmatpush.msra.mxu0 0.0
    %85 = vmatpush.msra.mxu0 0.0
    %86 = vmatpush.msra.mxu0 0.0
    %87 = vmatpush.msra.mxu0 0.0
    %88 = vmatpush.msra.mxu0 0.0
    %89 = vmatpush.msra.mxu0 0.0
    %90 = vmatpush.msra.mxu0 0.0
    %91 = vmatpush.msra.mxu0 0.0
    %92 = vmatpush.msra.mxu0 0.0
    %93 = vmatpush.msra.mxu0 0.0
    %94 = vmatpush.msra.mxu0 %v60
    %95 = vmatpush.msra.mxu0 %v59
    %96 = vmatmul.f32.gmra.mxu0 %v78
    %v97 = vpop.f32.mrf.mxu0
    %v98 = vadd.f32 0.0, %v97
    %99 = vdwg.mxu0
    %v100 = vadd.f32 %v58, %v98
    %vm101 = vcmask 58368
    %102 = vst.msk [vmem:[#allocation2] sm:$0x3] %vm101, %v100
    // Predicated region
    $region22: #{tpu_custom_call.1} parent=1 // pred_check
      %p103 = pneg %p31
    $region23: #{tpu_custom_call.1} parent=1 // pred_check_branch
      %105 = sbr.rel (%p103) target = $region25
    $region24: #{tpu_custom_call.1} parent=1 // pred_region
      %v106 = vld [vmem:[#allocation2] sm:$0x3]
      %v107 = vld [vmem:[%s2] sm:$0x1]
      %v109 = vperm.slane %v107, 0
      %v111 = vadd.f32 %v106, %v109
      %112 = vst.msk [vmem:[#allocation6] sm:$0x3] %vm101, %v111
    $region25: #{tpu_custom_call.1} parent=1 // pred_fallthru
      _
    // Predicated region
    $region26: #{tpu_custom_call.1} parent=1 // pred_check
      _
    $region27: #{tpu_custom_call.1} parent=1 // pred_check_branch
      %114 = sbr.rel (0) target = $region29
    $region28: #{tpu_custom_call.1} parent=1 // pred_region
      %116 = vsyncadd [#allocation5], 0
      %s118 = sshll.u32 [#allocation6], 4
      %s119 = int_to_ptr.vmem [resolvable:$true] %s118
      %s120 = sshll.u32 %s3, 4
      %s121 = int_to_ptr.hbm [resolvable:$true] %s120
      %123 = dma.vmem_to_hbm [thread:$0]  %s119, 32, %s121, [#allocation5]
    $region29: #{tpu_custom_call.1} parent=1 // pred_fallthru
      _
    // Predicated region
    $region30: #{tpu_custom_call.1} parent=1 // pred_check
      _
    $region31: #{tpu_custom_call.1} parent=1 // pred_check_branch
      %125 = sbr.rel (0) target = $region33
    $region32: #{tpu_custom_call.1} parent=1 // pred_region
      %127 = dma.done [#allocation5], 32
    $region33: #{tpu_custom_call.1} parent=1 // pred_fallthru
      _
    %128 = vsyncpa [#allocation4], 1
    %129 = vsyncpa [#allocation5], 1

</llo_original>
